<compile_context>
chip_gen: v5e
topology: v5e:2x2
jax: 0.10.0
libtpu: 0.0.40
codegen_flags: <defaults>
</compile_context>

<pallas_src>
import jax
import jax.numpy as jnp
from jax.experimental import pallas as pl
from jax.experimental.pallas import tpu as pltpu


# ----------------------------------------------------------------------------
# Zero-copy alias shell (default path)
# ----------------------------------------------------------------------------

def _identity_alias_kernel(x_hbm_ref, o_hbm_ref, flag_ref):
    # Output aliases the input, so the data is already in place in HBM.
    # No DMA, no compute.  Write a single SMEM scalar so the lowered kernel
    # body is non-empty (cheap, never touches HBM or VMEM).
    del x_hbm_ref, o_hbm_ref
    flag_ref[0] = jnp.int32(1)


def _identity_alias(x):
    return pl.pallas_call(
        _identity_alias_kernel,
        out_shape=jax.ShapeDtypeStruct(x.shape, x.dtype),
        in_specs=[pl.BlockSpec(memory_space=pl.ANY)],
        out_specs=pl.BlockSpec(memory_space=pl.ANY),
        scratch_shapes=[pltpu.SMEM((1,), jnp.int32)],
        input_output_aliases={0: 0},
        compiler_params=pltpu.CompilerParams(has_side_effects=True),
    )(x)


def identity_forward(x):
    """Identity forward pass: returns (an alias of) `x`, same shape/dtype.

    Zero HBM traffic when the caller donates the operand
    (jax.jit(identity_forward, donate_argnums=0)); one defensive copy
    otherwise.
    """
    if x.ndim == 0:
        return identity_forward(x.reshape(1, 1)).reshape(())
    if x.size == 0:
        return x
    return _identity_alias(x)


# ----------------------------------------------------------------------------
# Materializing lane-dense copy (for callers needing a fresh buffer)
# ----------------------------------------------------------------------------

def _identity_copy_kernel(x_ref, o_ref):
    # Pure passthrough of the current VMEM tile.
    o_ref[...] = x_ref[...]


def _sublane_pack(dtype) -> int:
    itemsize = jnp.dtype(dtype).itemsize
    if itemsize >= 4:
        return 8
    if itemsize == 2:
        return 16
    return 32


_LANE_CANDIDATES = (4096, 2048, 1024, 512, 256, 128)
_DEFAULT_VMEM_CAP = 64 * 1024 * 1024   # conservative (v7x-sized) fallback
_vmem_cap_cache = [None]


def _vmem_capacity_bytes() -> int:
    if _vmem_cap_cache[0] is None:
        cap = _DEFAULT_VMEM_CAP
        try:
            info = pltpu.get_tpu_info()
            queried = getattr(info, "vmem_capacity_bytes", None)
            if queried:
                cap = int(queried)
        except Exception:
            pass
        _vmem_cap_cache[0] = cap
    return _vmem_cap_cache[0]


def _copy_budget():
    """(block_bytes, vmem_limit_bytes) sized per generation from VMEM capacity."""
    cap = _vmem_capacity_bytes()
    # v7x (64 MiB VMEM)  -> 8 MiB blocks; v5e/v6e (128 MiB) -> 16 MiB blocks.
    block = min(16 * 1024 * 1024, max(4 * 1024 * 1024, cap // 8))
    # Double-buffered (in + out) footprint = 4 * block; add headroom.
    limit = 4 * block + 16 * 1024 * 1024
    return block, limit


def _copy_2d(x2d):
    """Tiled identity copy of a 2D array via a single Pallas call."""
    R, C = x2d.shape
    itemsize = jnp.dtype(x2d.dtype).itemsize
    pack = _sublane_pack(x2d.dtype)
    block_bytes, vmem_limit = _copy_budget()

    row_bytes = C * itemsize
    rows_target = max(pack, (block_bytes // max(1, row_bytes)) // pack * pack)

    if rows_target >= R:
        # Whole array fits in one block.  Split mid-size tensors into >=2 row
        # blocks so v7x's two TensorCores both participate (no effect on
        # single-TC v5e/v6e beyond one extra, fully pipelined grid step).
        total_bytes = R * row_bytes
        if total_bytes > (2 * 1024 * 1024) and R >= 2 * pack:
            half = pl.cdiv(R, 2)
            br = min(R, ((half + pack - 1) // pack) * pack)
        else:
            br = R
    else:
        br = min(R, rows_target)

    grid = (pl.cdiv(R, br),)  # any partial edge block is masked by Pallas

    return pl.pallas_call(
        _identity_copy_kernel,
        out_shape=jax.ShapeDtypeStruct((R, C), x2d.dtype),
        grid=grid,
        in_specs=[pl.BlockSpec((br, C), lambda i: (i, 0))],
        out_specs=pl.BlockSpec((br, C), lambda i: (i, 0)),
        compiler_params=pltpu.CompilerParams(
            dimension_semantics=("parallel",),
            vmem_limit_bytes=vmem_limit,
        ),
        cost_estimate=pl.CostEstimate(
            flops=0,
            transcendentals=0,
            bytes_accessed=2 * R * C * itemsize,
        ),
    )(x2d)


def identity_copy_forward(x):
    """Identity that materializes a fresh (non-aliased) copy of `x`."""
    orig_shape = x.shape
    n = x.size
    if n == 0:
        return x

    flat = x.reshape(-1)

    lane = next((c for c in _LANE_CANDIDATES if n % c == 0), None)
    if lane is not None:
        out2d = _copy_2d(flat.reshape(n // lane, lane))
        return out2d.reshape(orig_shape)

    # Element count not a multiple of 128: pad up to a 128 multiple so the
    # copy stays lane-dense (full unmasked stores), then strip the pad.
    pad = (-n) % 128
    padded = jnp.pad(flat, (0, pad))
    m = n + pad
    lane = next(c for c in _LANE_CANDIDATES if m % c == 0)
    out2d = _copy_2d(padded.reshape(m // lane, lane))
    return out2d.reshape(-1)[:n].reshape(orig_shape)


if __name__ == "__main__":
    key = jax.random.PRNGKey(0)
    # Small NCHW input consistent with an ImageNet-style feature map.
    x = jax.random.normal(key, (2, 4, 16, 16), dtype=jnp.float32)

    # Default zero-copy alias path.
    y = jax.jit(identity_forward)(x)
    jax.block_until_ready(y)
    assert y.shape == x.shape, (y.shape, x.shape)
    assert y.dtype == x.dtype, (y.dtype, x.dtype)
    assert bool(jnp.array_equal(y, x)), "alias identity output does not match input"

    # Materializing lane-dense copy path.
    y2 = jax.jit(identity_copy_forward)(x)
    jax.block_until_ready(y2)
    assert y2.shape == x.shape, (y2.shape, x.shape)
    assert y2.dtype == x.dtype, (y2.dtype, x.dtype)
    assert bool(jnp.array_equal(y2, x)), "copy identity output does not match input"

    print("KERNEL_OK")
</pallas_src>

<mosaic_0001>
module attributes {stable_mosaic.version = 11 : i64} {
  func.func @_identity_alias_kernel(%arg0: memref<2x4x16x16xf32, #tpu.memory_space<any>>, %arg1: memref<2x4x16x16xf32, #tpu.memory_space<any>>, %arg2: memref<1xi32, #tpu.memory_space<smem>>) attributes {dimension_semantics = [], scalar_prefetch = 0 : i64, scratch_operands = 1 : i64, tpu.core_type = #tpu.core_type<tc>} {
    %c1_i32 = arith.constant 1 : i32
    %c0 = arith.constant 0 : index
    %0 = memref.load %arg2[%c0] : memref<1xi32, #tpu.memory_space<smem>>
    memref.store %c1_i32, %arg2[%c0] : memref<1xi32, #tpu.memory_space<smem>>
    return
  }
}

</mosaic_0001>

<llo_original>
// kernel: identity_forward.1
$region0: #{identity_forward.1}
  #allocation0 [shape = 'u32[]', space=smem, size = 0x4, offset = 0x4, fixed_abs, tag = 'smem constant byte address 0x4 - core index']
  #allocation1 [shape = 'u32[72,128]{1,0:T(1,128)}', space=vmem, size = 0x9000, scoped, tag = 'internal scratch']
  #allocation2 [shape = 's32[1]{0:T(128)}', space=smem, size = 0x200, scoped, tag = 'scratch operand']
  %s0 = inlined_call_operand.hbm [shape: f32[2,4,16,16], index: 0, kind: input, shape index: {}, may-alias: {0,1}]
  %s1 = inlined_call_operand.hbm [shape: f32[2,4,16,16], index: 1, kind: output, shape index: {}, may-alias: {0,1}]
  %s2 = sld [smem:[#allocation0]]
  $region2: #{identity_forward.1} parent=0
    _
  %s4 = ssub.s32 1, %s2
  %s5 = scalar_select 0, %s4, %s2
  %s6 = scalar_lea.smem [#allocation2], 0
  %7 = sst [smem:[%s6]] 1

</llo_original>
